<compile_context>
chip_gen: v5e
topology: v5e:2x2
jax: 0.10.0
libtpu: 0.0.40
codegen_flags: <defaults>
</compile_context>

<pallas_src>
import functools

import jax
import jax.numpy as jnp
from jax.experimental import pallas as pl
from jax.experimental.pallas import tpu as pltpu


def _round_up(x, m):
    return ((x + m - 1) // m) * m


def _triplet_mlp_kernel(x1_ref, x2_ref, x3_ref, w1_ref, b1_ref, w2_ref, b2_ref,
                        o1_ref, o2_ref, o3_ref, xslab_ref):
    """Fused shared-embedding forward for one batch tile of all three members.

    x*_ref  : (TB, D_pad)      pre-padded inputs (compute dtype), per-tile.
    w1_ref  : (D_pad, H_pad)   zero-padded, VMEM-resident (index_map (0,0)).
    b1_ref  : (1, H_pad)       float32 (epilogue stays in f32).
    w2_ref  : (H_pad, E_pad)   zero-padded, VMEM-resident.
    b2_ref  : (1, E_pad)       float32.
    o*_ref  : (TB, E_pad)      lane-dense output tiles.
    xslab_ref: VMEM scratch (3*TB, D_pad), compute dtype.
    """
    tb = x1_ref.shape[0]

    # Assemble the three members into one activation slab so both layers run
    # as a single fused matmul chain (3*TB rows per MXU pass).  Inputs are
    # pre-padded, so these are full (8,128)-aligned, unmasked stores and the
    # D-pad lanes are already zero.
    xslab_ref[pl.ds(0 * tb, tb), :] = x1_ref[...]
    xslab_ref[pl.ds(1 * tb, tb), :] = x2_ref[...]
    xslab_ref[pl.ds(2 * tb, tb), :] = x3_ref[...]

    x = xslab_ref[...]
    # Layer 1 on the MXU, f32 accumulation; bias + ReLU kept in f32.
    h = jnp.dot(x, w1_ref[...], preferred_element_type=jnp.float32)
    h = jnp.maximum(h + b1_ref[...], 0.0)
    # Single downcast before the second MXU matmul (no-op for f32 params).
    h = h.astype(w2_ref.dtype)
    out = jnp.dot(h, w2_ref[...], preferred_element_type=jnp.float32)
    out = out + b2_ref[...]

    # Lane-dense (E_pad = multiple of 128), sublane-aligned (TB mult of 8)
    # unmasked stores.
    o1_ref[...] = out[0 * tb:1 * tb, :].astype(o1_ref.dtype)
    o2_ref[...] = out[1 * tb:2 * tb, :].astype(o2_ref.dtype)
    o3_ref[...] = out[2 * tb:3 * tb, :].astype(o3_ref.dtype)


def prepare_params(params, compute_dtype=jnp.bfloat16):
    """One-time (init-time) padding + casting of the embedding-net params.

    Hoisted out of the per-step forward so the hot path never re-materializes
    the weight matrices in HBM.
    """
    w1, b1, w2, b2 = params
    d_in, hidden = w1.shape
    emb = w2.shape[1]
    d_pad = _round_up(d_in, 128)
    h_pad = _round_up(hidden, 128)
    e_pad = _round_up(emb, 128)

    w1p = jnp.zeros((d_pad, h_pad), compute_dtype).at[:d_in, :hidden].set(
        w1.astype(compute_dtype))
    w2p = jnp.zeros((h_pad, e_pad), compute_dtype).at[:hidden, :emb].set(
        w2.astype(compute_dtype))
    b1p = jnp.zeros((1, h_pad), jnp.float32).at[:, :hidden].set(
        b1.astype(jnp.float32).reshape(1, hidden))
    b2p = jnp.zeros((1, e_pad), jnp.float32).at[:, :emb].set(
        b2.astype(jnp.float32).reshape(1, emb))

    padded = (w1p, b1p, w2p, b2p)
    dims = (d_in, hidden, emb)
    return padded, dims


@functools.partial(jax.jit, static_argnames=("dims", "out_dtype"))
def triplet_net_forward(x1, x2, x3, padded_params, dims, out_dtype=None):
    """TripletNet.forward: shared embedding net applied to (x1, x2, x3)."""
    w1p, b1p, w2p, b2p = padded_params
    d_in, _, emb = dims
    B = x1.shape[0]
    assert x1.shape[1] == d_in and x2.shape == x1.shape and x3.shape == x1.shape

    cdt = w1p.dtype
    if out_dtype is None:
        out_dtype = x1.dtype

    D_pad = w1p.shape[0]
    H_pad = w1p.shape[1]
    E_pad = w2p.shape[1]

    # Batch tile: >=256 rows per member feeds the 256-wide MXU on v6e/v7x;
    # collapses to a single 8-row tile for toy batches.
    TB = min(256, _round_up(B, 8))
    B_pad = _round_up(B, TB)
    n_tiles = B_pad // TB

    # Pre-pad inputs (rows -> TB multiple, lanes -> 128 multiple) and cast to
    # the compute dtype, so every kernel-side store is a full aligned tile
    # and pad lanes are zero.
    def pad_x(x):
        return jnp.pad(x.astype(cdt), ((0, B_pad - B), (0, D_pad - d_in)))

    x1p, x2p, x3p = pad_x(x1), pad_x(x2), pad_x(x3)

    x_spec = pl.BlockSpec((TB, D_pad), lambda i: (i, 0))
    w1_spec = pl.BlockSpec((D_pad, H_pad), lambda i: (0, 0))   # VMEM-resident
    b1_spec = pl.BlockSpec((1, H_pad), lambda i: (0, 0))
    w2_spec = pl.BlockSpec((H_pad, E_pad), lambda i: (0, 0))   # VMEM-resident
    b2_spec = pl.BlockSpec((1, E_pad), lambda i: (0, 0))
    o_spec = pl.BlockSpec((TB, E_pad), lambda i: (i, 0))

    # VMEM budget derived from the actual footprint (double-buffered tiles +
    # resident weights + slab), clamped so it is safe on v7x (64 MiB/TC) and
    # not artificially small on v5e/v6e (128 MiB).
    it = jnp.dtype(cdt).itemsize
    ot = jnp.dtype(out_dtype).itemsize
    need = (2 * 3 * TB * D_pad * it                       # input tiles (dbl-buf)
            + 2 * (D_pad * H_pad + H_pad * E_pad) * it    # weights
            + 2 * (H_pad + E_pad) * 4                     # biases
            + 2 * 3 * TB * E_pad * ot                     # output tiles
            + 3 * TB * D_pad * it)                        # slab scratch
    vmem_budget = int(min(100 * 2**20, max(16 * 2**20, 3 * need)))

    flops = 2 * 3 * B_pad * (D_pad * H_pad + H_pad * E_pad)
    bytes_accessed = int(3 * B_pad * D_pad * it
                         + (D_pad * H_pad + H_pad * E_pad) * it
                         + (H_pad + E_pad) * 4
                         + 3 * B_pad * E_pad * ot)
    cost = pl.CostEstimate(flops=flops, transcendentals=0,
                           bytes_accessed=bytes_accessed)

    o1, o2, o3 = pl.pallas_call(
        _triplet_mlp_kernel,
        out_shape=tuple(jax.ShapeDtypeStruct((B_pad, E_pad), out_dtype)
                        for _ in range(3)),
        grid=(n_tiles,),
        in_specs=[x_spec, x_spec, x_spec, w1_spec, b1_spec, w2_spec, b2_spec],
        out_specs=(o_spec, o_spec, o_spec),
        scratch_shapes=[pltpu.VMEM((3 * TB, D_pad), cdt)],
        compiler_params=pltpu.CompilerParams(
            dimension_semantics=("parallel",),
            vmem_limit_bytes=vmem_budget,
        ),
        cost_estimate=cost,
    )(x1p, x2p, x3p, w1p, b1p, w2p, b2p)

    # Cheap XLA slices back to the logical (B, E) shapes; the kernel itself
    # only ever emits lane-dense, unmasked stores.
    return o1[:B, :emb], o2[:B, :emb], o3[:B, :emb]


def get_embedding(x, padded_params, dims, out_dtype=None):
    """TripletNet.get_embedding equivalent (single input through the shared net)."""
    o, _, _ = triplet_net_forward(x, x, x, padded_params, dims, out_dtype)
    return o


def init_embedding_params(key, d_in, hidden, emb_dim, dtype=jnp.float32):
    """Deterministic init of the embedding MLP, (in, out)-layout weights."""
    k1, k2, k3, k4 = jax.random.split(key, 4)
    w1 = jax.random.normal(k1, (d_in, hidden), dtype) * (1.0 / jnp.sqrt(d_in))
    b1 = jax.random.normal(k2, (1, hidden), dtype) * 0.01
    w2 = jax.random.normal(k3, (hidden, emb_dim), dtype) * (1.0 / jnp.sqrt(hidden))
    b2 = jax.random.normal(k4, (1, emb_dim), dtype) * 0.01
    return w1, b1, w2, b2


if __name__ == "__main__":
    # Small shapes consistent with a triplet embedding net.
    B, D_IN, HIDDEN, EMB = 2, 32, 32, 16

    key = jax.random.PRNGKey(0)
    kx1, kx2, kx3, kp = jax.random.split(key, 4)
    x1 = jax.random.normal(kx1, (B, D_IN), jnp.float32)
    x2 = jax.random.normal(kx2, (B, D_IN), jnp.float32)
    x3 = jax.random.normal(kx3, (B, D_IN), jnp.float32)
    params = init_embedding_params(kp, D_IN, HIDDEN, EMB)

    def ref_embed(x, p):
        w1, b1, w2, b2 = p
        h = jnp.maximum(x @ w1 + b1, 0.0)
        return h @ w2 + b2

    # ---- f32 compute path (matches the PyTorch reference semantics) ----
    pp_f32, dims = prepare_params(params, compute_dtype=jnp.float32)
    o1, o2, o3 = triplet_net_forward(x1, x2, x3, pp_f32, dims)
    jax.block_until_ready((o1, o2, o3))

    r1, r2, r3 = (ref_embed(x, params) for x in (x1, x2, x3))
    assert o1.shape == (B, EMB) and o2.shape == (B, EMB) and o3.shape == (B, EMB)
    assert jnp.allclose(o1, r1, atol=1e-5) and jnp.allclose(o2, r2, atol=1e-5) \
        and jnp.allclose(o3, r3, atol=1e-5)

    # ---- default bf16 compute path (fast MXU path, f32 accumulation) ----
    pp_bf16, dims_bf16 = prepare_params(params)   # compute_dtype defaults to bf16
    q1, q2, q3 = triplet_net_forward(x1, x2, x3, pp_bf16, dims_bf16)
    jax.block_until_ready((q1, q2, q3))

    def ref_embed_bf16(x, p):
        w1, b1, w2, b2 = (v.astype(jnp.bfloat16) for v in p)
        xb = x.astype(jnp.bfloat16)
        h = jnp.maximum(xb.astype(jnp.float32) @ w1.astype(jnp.float32)
                        + b1.astype(jnp.float32), 0.0)
        hb = h.astype(jnp.bfloat16)
        return (hb.astype(jnp.float32) @ w2.astype(jnp.float32)
                + b2.astype(jnp.float32))

    s1, s2, s3 = (ref_embed_bf16(x, params) for x in (x1, x2, x3))
    assert jnp.allclose(q1, s1, atol=5e-2, rtol=5e-2)
    assert jnp.allclose(q2, s2, atol=5e-2, rtol=5e-2)
    assert jnp.allclose(q3, s3, atol=5e-2, rtol=5e-2)

    print("KERNEL_OK")
</pallas_src>

<mosaic_0001>
module attributes {stable_mosaic.version = 11 : i64} {
  func.func @_triplet_mlp_kernel(%arg0: i32, %arg1: memref<8x128xf32, #tpu.memory_space<vmem>>, %arg2: memref<8x128xf32, #tpu.memory_space<vmem>>, %arg3: memref<8x128xf32, #tpu.memory_space<vmem>>, %arg4: memref<128x128xf32, #tpu.memory_space<vmem>>, %arg5: memref<1x128xf32, #tpu.memory_space<vmem>>, %arg6: memref<128x128xf32, #tpu.memory_space<vmem>>, %arg7: memref<1x128xf32, #tpu.memory_space<vmem>>, %arg8: memref<8x128xf32, #tpu.memory_space<vmem>>, %arg9: memref<8x128xf32, #tpu.memory_space<vmem>>, %arg10: memref<8x128xf32, #tpu.memory_space<vmem>>, %arg11: memref<24x128xf32, #tpu.memory_space<vmem>>) attributes {dimension_semantics = [#tpu.dimension_semantics<parallel>], iteration_bounds = array<i64: 1>, scalar_prefetch = 0 : i64, scratch_operands = 1 : i64, tpu.core_type = #tpu.core_type<tc>, window_params = [{transform_indices = @transform_0, window_bounds = array<i64: 8, 128>}, {transform_indices = @transform_1, window_bounds = array<i64: 8, 128>}, {transform_indices = @transform_2, window_bounds = array<i64: 8, 128>}, {pipeline_mode = #tpu.pipeline_mode<synchronous>, transform_indices = @transform_3, window_bounds = array<i64: 128, 128>}, {pipeline_mode = #tpu.pipeline_mode<synchronous>, transform_indices = @transform_4, window_bounds = array<i64: 1, 128>}, {pipeline_mode = #tpu.pipeline_mode<synchronous>, transform_indices = @transform_5, window_bounds = array<i64: 128, 128>}, {pipeline_mode = #tpu.pipeline_mode<synchronous>, transform_indices = @transform_6, window_bounds = array<i64: 1, 128>}, {transform_indices = @transform_7, window_bounds = array<i64: 8, 128>}, {transform_indices = @transform_8, window_bounds = array<i64: 8, 128>}, {transform_indices = @transform_9, window_bounds = array<i64: 8, 128>}]} {
    %c0 = arith.constant 0 : index
    %c0_0 = arith.constant 0 : index
    %0 = vector.load %arg1[%c0, %c0_0] : memref<8x128xf32, #tpu.memory_space<vmem>>, vector<8x128xf32>
    %c0_1 = arith.constant 0 : index
    %c0_2 = arith.constant 0 : index
    %1 = vector.load %arg11[%c0_1, %c0_2] : memref<24x128xf32, #tpu.memory_space<vmem>>, vector<8x128xf32>
    tpu.vector_store %arg11[%c0_1, %c0_2], %0 {strides = array<i32>} : memref<24x128xf32, #tpu.memory_space<vmem>>, vector<8x128xf32>,
    %c0_3 = arith.constant 0 : index
    %c0_4 = arith.constant 0 : index
    %2 = vector.load %arg2[%c0_3, %c0_4] : memref<8x128xf32, #tpu.memory_space<vmem>>, vector<8x128xf32>
    %c8 = arith.constant 8 : index
    %c0_5 = arith.constant 0 : index
    %3 = vector.load %arg11[%c8, %c0_5] : memref<24x128xf32, #tpu.memory_space<vmem>>, vector<8x128xf32>
    tpu.vector_store %arg11[%c8, %c0_5], %2 {strides = array<i32>} : memref<24x128xf32, #tpu.memory_space<vmem>>, vector<8x128xf32>,
    %c0_6 = arith.constant 0 : index
    %c0_7 = arith.constant 0 : index
    %4 = vector.load %arg3[%c0_6, %c0_7] : memref<8x128xf32, #tpu.memory_space<vmem>>, vector<8x128xf32>
    %c16 = arith.constant 16 : index
    %c0_8 = arith.constant 0 : index
    %5 = vector.load %arg11[%c16, %c0_8] : memref<24x128xf32, #tpu.memory_space<vmem>>, vector<8x128xf32>
    tpu.vector_store %arg11[%c16, %c0_8], %4 {strides = array<i32>} : memref<24x128xf32, #tpu.memory_space<vmem>>, vector<8x128xf32>,
    %c0_9 = arith.constant 0 : index
    %c0_10 = arith.constant 0 : index
    %6 = vector.load %arg11[%c0_9, %c0_10] : memref<24x128xf32, #tpu.memory_space<vmem>>, vector<24x128xf32>
    %c0_11 = arith.constant 0 : index
    %c0_12 = arith.constant 0 : index
    %7 = vector.load %arg4[%c0_11, %c0_12] : memref<128x128xf32, #tpu.memory_space<vmem>>, vector<128x128xf32>
    %cst = arith.constant dense<0.000000e+00> : vector<24x128xf32>
    %8 = tpu.matmul %6, %7, %cst {dimension_numbers = #tpu.dot_dimension_numbers<[1], [0], [0], [1], [0, 0, 1, 1], [], []>} : vector<24x128xf32>, vector<128x128xf32>, vector<24x128xf32> -> vector<24x128xf32>
    %c0_13 = arith.constant 0 : index
    %c0_14 = arith.constant 0 : index
    %9 = vector.load %arg5[%c0_13, %c0_14] : memref<1x128xf32, #tpu.memory_space<vmem>>, vector<1x128xf32>
    %10 = vector.broadcast %9 : vector<1x128xf32> to vector<24x128xf32>
    %11 = arith.addf %8, %10 : vector<24x128xf32>
    %cst_15 = arith.constant 0.000000e+00 : f32
    %12 = vector.broadcast %cst_15 : f32 to vector<24x128xf32>
    %13 = arith.maximumf %11, %12 : vector<24x128xf32>
    %c0_16 = arith.constant 0 : index
    %c0_17 = arith.constant 0 : index
    %14 = vector.load %arg6[%c0_16, %c0_17] : memref<128x128xf32, #tpu.memory_space<vmem>>, vector<128x128xf32>
    %cst_18 = arith.constant dense<0.000000e+00> : vector<24x128xf32>
    %15 = tpu.matmul %13, %14, %cst_18 {dimension_numbers = #tpu.dot_dimension_numbers<[1], [0], [0], [1], [0, 0, 1, 1], [], []>} : vector<24x128xf32>, vector<128x128xf32>, vector<24x128xf32> -> vector<24x128xf32>
    %c0_19 = arith.constant 0 : index
    %c0_20 = arith.constant 0 : index
    %16 = vector.load %arg7[%c0_19, %c0_20] : memref<1x128xf32, #tpu.memory_space<vmem>>, vector<1x128xf32>
    %17 = vector.broadcast %16 : vector<1x128xf32> to vector<24x128xf32>
    %18 = arith.addf %15, %17 : vector<24x128xf32>
    %19 = vector.extract_strided_slice %18 {offsets = [0, 0], sizes = [8, 128], strides = [1, 1]} : vector<24x128xf32> to vector<8x128xf32>
    %c0_21 = arith.constant 0 : index
    %c0_22 = arith.constant 0 : index
    %20 = vector.load %arg8[%c0_21, %c0_22] : memref<8x128xf32, #tpu.memory_space<vmem>>, vector<8x128xf32>
    tpu.vector_store %arg8[%c0_21, %c0_22], %19 {strides = array<i32>} : memref<8x128xf32, #tpu.memory_space<vmem>>, vector<8x128xf32>,
    %21 = vector.extract_strided_slice %18 {offsets = [8, 0], sizes = [8, 128], strides = [1, 1]} : vector<24x128xf32> to vector<8x128xf32>
    %c0_23 = arith.constant 0 : index
    %c0_24 = arith.constant 0 : index
    %22 = vector.load %arg9[%c0_23, %c0_24] : memref<8x128xf32, #tpu.memory_space<vmem>>, vector<8x128xf32>
    tpu.vector_store %arg9[%c0_23, %c0_24], %21 {strides = array<i32>} : memref<8x128xf32, #tpu.memory_space<vmem>>, vector<8x128xf32>,
    %23 = vector.extract_strided_slice %18 {offsets = [16, 0], sizes = [8, 128], strides = [1, 1]} : vector<24x128xf32> to vector<8x128xf32>
    %c0_25 = arith.constant 0 : index
    %c0_26 = arith.constant 0 : index
    %24 = vector.load %arg10[%c0_25, %c0_26] : memref<8x128xf32, #tpu.memory_space<vmem>>, vector<8x128xf32>
    tpu.vector_store %arg10[%c0_25, %c0_26], %23 {strides = array<i32>} : memref<8x128xf32, #tpu.memory_space<vmem>>, vector<8x128xf32>,
    return
  }
  func.func @transform_0(%arg0: i32) -> (i32, i32) {
    %c0_i32 = arith.constant 0 : i32
    %c0_i32_0 = arith.constant 0 : i32
    return %arg0, %c0_i32 : i32, i32
  }
  func.func @transform_1(%arg0: i32) -> (i32, i32) {
    %c0_i32 = arith.constant 0 : i32
    %c0_i32_0 = arith.constant 0 : i32
    return %arg0, %c0_i32 : i32, i32
  }
  func.func @transform_2(%arg0: i32) -> (i32, i32) {
    %c0_i32 = arith.constant 0 : i32
    %c0_i32_0 = arith.constant 0 : i32
    return %arg0, %c0_i32 : i32, i32
  }
  func.func @transform_3(%arg0: i32) -> (i32, i32) {
    %c0_i32 = arith.constant 0 : i32
    %c0_i32_0 = arith.constant 0 : i32
    %c0_i32_1 = arith.constant 0 : i32
    return %c0_i32, %c0_i32_0 : i32, i32
  }
  func.func @transform_4(%arg0: i32) -> (i32, i32) {
    %c0_i32 = arith.constant 0 : i32
    %c0_i32_0 = arith.constant 0 : i32
    %c0_i32_1 = arith.constant 0 : i32
    return %c0_i32, %c0_i32_0 : i32, i32
  }
  func.func @transform_5(%arg0: i32) -> (i32, i32) {
    %c0_i32 = arith.constant 0 : i32
    %c0_i32_0 = arith.constant 0 : i32
    %c0_i32_1 = arith.constant 0 : i32
    return %c0_i32, %c0_i32_0 : i32, i32
  }
  func.func @transform_6(%arg0: i32) -> (i32, i32) {
    %c0_i32 = arith.constant 0 : i32
    %c0_i32_0 = arith.constant 0 : i32
    %c0_i32_1 = arith.constant 0 : i32
    return %c0_i32, %c0_i32_0 : i32, i32
  }
  func.func @transform_7(%arg0: i32) -> (i32, i32) {
    %c0_i32 = arith.constant 0 : i32
    %c0_i32_0 = arith.constant 0 : i32
    return %arg0, %c0_i32 : i32, i32
  }
  func.func @transform_8(%arg0: i32) -> (i32, i32) {
    %c0_i32 = arith.constant 0 : i32
    %c0_i32_0 = arith.constant 0 : i32
    return %arg0, %c0_i32 : i32, i32
  }
  func.func @transform_9(%arg0: i32) -> (i32, i32) {
    %c0_i32 = arith.constant 0 : i32
    %c0_i32_0 = arith.constant 0 : i32
    return %arg0, %c0_i32 : i32, i32
  }
}

</mosaic_0001>

<llo_original>
// kernel: triplet_net_forward.1
$region0: #{triplet_net_forward.1}
  #allocation0 [shape = 'u32[]', space=smem, size = 0x4, offset = 0x4, fixed_abs, tag = 'smem constant byte address 0x4 - core index']
  #allocation1 [shape = 'u32[72,128]{1,0:T(1,128)}', space=vmem, size = 0x9000, scoped, tag = 'internal scratch']
  #allocation2 [shape = 'f32[24,128]{1,0:T(8,128)}', space=vmem, size = 0x3000, scoped, tag = 'scratch operand']
  %s0 = inlined_call_operand.vmem [shape: f32[8,128], index: 0, kind: input, shape index: {}]
  %s1 = inlined_call_operand.vmem [shape: f32[8,128], index: 1, kind: input, shape index: {}]
  %s2 = inlined_call_operand.vmem [shape: f32[8,128], index: 2, kind: input, shape index: {}]
  %s3 = inlined_call_operand.hbm [shape: f32[128,128], index: 3, kind: input, shape index: {}]
  %s4 = inlined_call_operand.vmem [shape: f32[1,128], index: 4, kind: input, shape index: {}]
  %s5 = inlined_call_operand.hbm [shape: f32[128,128], index: 5, kind: input, shape index: {}]
  %s6 = inlined_call_operand.vmem [shape: f32[1,128], index: 6, kind: input, shape index: {}]
  %s7 = inlined_call_operand.vmem [shape: f32[8,128], index: 7, kind: output, shape index: {0}]
  %s8 = inlined_call_operand.vmem [shape: f32[8,128], index: 8, kind: output, shape index: {1}]
  %s9 = inlined_call_operand.vmem [shape: f32[8,128], index: 9, kind: output, shape index: {2}]
  %10 = xla_tuple %s7, %s8, %s9
  %s11 = sld [smem:[#allocation0]]
  $region62: #{triplet_net_forward.1} parent=0
    _
  %s13 = ssub.s32 1, %s11
  %s14 = scalar_select 0, %s13, %s11
  $region1: #{triplet_net_forward.1} parent=0
    #allocation3 [shape = 'u8[65536]{0}', space=vmem, size = 0x10000, scoped, tag = 'input window, operand 3, single buffered']
    #allocation4 [shape = 's32[1]{0}', space=sflag, size = 0x4, scoped, tag = 'scoped memory for triplet_net_forward.1']
    #allocation5 [shape = 'u8[65536]{0}', space=vmem, size = 0x10000, scoped, tag = 'input window, operand 5, single buffered']
    #allocation6 [shape = 's32[1]{0}', space=sflag, size = 0x4, scoped, tag = 'scoped memory for triplet_net_forward.1']
    %15 = vsyncpa [#allocation4], 0
    %16 = vsyncpa [#allocation6], 0
    // Predicated region
    $region2: #{triplet_net_forward.1} parent=1 // pred_check
      _
    $region3: #{triplet_net_forward.1} parent=1 // pred_check_branch
      %18 = sbr.rel (0) target = $region5
    $region4: #{triplet_net_forward.1} parent=1 // pred_region
      _
    $region5: #{triplet_net_forward.1} parent=1 // pred_fallthru
      _
    // Predicated region
    $region6: #{triplet_net_forward.1} parent=1 // pred_check
      _
    $region7: #{triplet_net_forward.1} parent=1 // pred_check_branch
      %20 = sbr.rel (0) target = $region9
    $region8: #{triplet_net_forward.1} parent=1 // pred_region
      _
    $region9: #{triplet_net_forward.1} parent=1 // pred_fallthru
      _
    // Predicated region
    $region10: #{triplet_net_forward.1} parent=1 // pred_check
      _
    $region11: #{triplet_net_forward.1} parent=1 // pred_check_branch
      %22 = sbr.rel (0) target = $region13
    $region12: #{triplet_net_forward.1} parent=1 // pred_region
      _
    $region13: #{triplet_net_forward.1} parent=1 // pred_fallthru
      _
    // Predicated region
    $region14: #{triplet_net_forward.1} parent=1 // pred_check
      _
    $region15: #{triplet_net_forward.1} parent=1 // pred_check_branch
      %24 = sbr.rel (0) target = $region17
    $region16: #{triplet_net_forward.1} parent=1 // pred_region
      %26 = vsyncadd [#allocation4], 0
      %s27 = sshll.u32 %s3, 4
      %s28 = int_to_ptr.hbm [resolvable:$true] %s27
      %s29 = sshll.u32 [#allocation3], 4
      %s30 = int_to_ptr.vmem [resolvable:$true] %s29
      %35 = dma.hbm_to_vmem [thread:$0]  %s28, 2048, %s30, [#allocation4], 128, 128, 8
    $region17: #{triplet_net_forward.1} parent=1 // pred_fallthru
      _
    // Predicated region
    $region18: #{triplet_net_forward.1} parent=1 // pred_check
      _
    $region19: #{triplet_net_forward.1} parent=1 // pred_check_branch
      %37 = sbr.rel (0) target = $region21
    $region20: #{triplet_net_forward.1} parent=1 // pred_region
      _
    $region21: #{triplet_net_forward.1} parent=1 // pred_fallthru
      _
    // Predicated region
    $region22: #{triplet_net_forward.1} parent=1 // pred_check
      _
    $region23: #{triplet_net_forward.1} parent=1 // pred_check_branch
      %39 = sbr.rel (0) target = $region25
    $region24: #{triplet_net_forward.1} parent=1 // pred_region
      %41 = vsyncadd [#allocation6], 0
      %s42 = sshll.u32 %s5, 4
      %s43 = int_to_ptr.hbm [resolvable:$true] %s42
      %s44 = sshll.u32 [#allocation5], 4
      %s45 = int_to_ptr.vmem [resolvable:$true] %s44
      %50 = dma.hbm_to_vmem [thread:$0]  %s43, 2048, %s45, [#allocation6], 128, 128, 8
    $region25: #{triplet_net_forward.1} parent=1 // pred_fallthru
      _
    // Predicated region
    $region26: #{triplet_net_forward.1} parent=1 // pred_check
      _
    $region27: #{triplet_net_forward.1} parent=1 // pred_check_branch
      %52 = sbr.rel (0) target = $region29
    $region28: #{triplet_net_forward.1} parent=1 // pred_region
      _
    $region29: #{triplet_net_forward.1} parent=1 // pred_fallthru
      _
    // Predicated region
    $region30: #{triplet_net_forward.1} parent=1 // pred_check
      _
    $region31: #{triplet_net_forward.1} parent=1 // pred_check_branch
      %54 = sbr.rel (0) target = $region33
    $region32: #{triplet_net_forward.1} parent=1 // pred_region
      %56 = dma.done [#allocation4], 2048
    $region33: #{triplet_net_forward.1} parent=1 // pred_fallthru
      _
    // Predicated region
    $region34: #{triplet_net_forward.1} parent=1 // pred_check
      _
    $region35: #{triplet_net_forward.1} parent=1 // pred_check_branch
      %58 = sbr.rel (0) target = $region37
    $region36: #{triplet_net_forward.1} parent=1 // pred_region
      %60 = dma.done [#allocation6], 2048
    $region37: #{triplet_net_forward.1} parent=1 // pred_fallthru
      _
    %v61 = vld [vmem:[%s0] sm:$0xff]
    %62 = vst [vmem:[#allocation2] sm:$0xff] %v61
    %v63 = vld [vmem:[%s1] sm:$0xff]
    %64 = vst [vmem:[#allocation2 + $0x8] sm:$0xff] %v63
    %v65 = vld [vmem:[%s2] sm:$0xff]
    %66 = vst [vmem:[#allocation2 + $0x10] sm:$0xff] %v65
    %v67 = vld [vmem:[#allocation2] sm:$0xff]
    %v68 = vld [vmem:[#allocation2 + $0x8] sm:$0xff]
    %v69 = vld [vmem:[#allocation2 + $0x10] sm:$0xff]
    %v70 = vld [vmem:[#allocation3] sm:$0xff]
    %v71 = vld [vmem:[#allocation3 + $0x8] sm:$0xff]
    %v72 = vld [vmem:[#allocation3 + $0x10] sm:$0xff]
    %v73 = vld [vmem:[#allocation3 + $0x18] sm:$0xff]
    %v74 = vld [vmem:[#allocation3 + $0x20] sm:$0xff]
    %v75 = vld [vmem:[#allocation3 + $0x28] sm:$0xff]
    %v76 = vld [vmem:[#allocation3 + $0x30] sm:$0xff]
    %v77 = vld [vmem:[#allocation3 + $0x38] sm:$0xff]
    %v78 = vld [vmem:[#allocation3 + $0x40] sm:$0xff]
    %v79 = vld [vmem:[#allocation3 + $0x48] sm:$0xff]
    %v80 = vld [vmem:[#allocation3 + $0x50] sm:$0xff]
    %v81 = vld [vmem:[#allocation3 + $0x58] sm:$0xff]
    %v82 = vld [vmem:[#allocation3 + $0x60] sm:$0xff]
    %v83 = vld [vmem:[#allocation3 + $0x68] sm:$0xff]
    %v84 = vld [vmem:[#allocation3 + $0x70] sm:$0xff]
    %v85 = vld [vmem:[#allocation3 + $0x78] sm:$0xff]
    %v86 = vld [vmem:[%s4] sm:$0x1]
    %v88 = vperm.slane %v86, 0
    %90 = vmatpush.msra.mxu0 %v85
    %91 = vmatpush.msra.mxu0 %v84
    %92 = vmatpush.msra.mxu0 %v83
    %93 = vmatpush.msra.mxu0 %v82
    %94 = vmatpush.msra.mxu0 %v81
    %95 = vmatpush.msra.mxu0 %v80
    %96 = vmatpush.msra.mxu0 %v79
    %97 = vmatpush.msra.mxu0 %v78
    %98 = vmatpush.msra.mxu0 %v77
    %99 = vmatpush.msra.mxu0 %v76
    %100 = vmatpush.msra.mxu0 %v75
    %101 = vmatpush.msra.mxu0 %v74
    %102 = vmatpush.msra.mxu0 %v73
    %103 = vmatpush.msra.mxu0 %v72
    %104 = vmatpush.msra.mxu0 %v71
    %105 = vmatpush.msra.mxu0 %v70
    %106 = vmatmul.f32.gmra.mxu0 %v67
    %v107 = vpop.f32.mrf.mxu0
    %v108 = vadd.f32 %v88, %v107
    %109 = vmatmul.f32.gmra.mxu0 %v68
    %v110 = vpop.f32.mrf.mxu0
    %v111 = vadd.f32 %v88, %v110
    %112 = vmatmul.f32.gmra.mxu0 %v69
    %v113 = vpop.f32.mrf.mxu0
    %v114 = vadd.f32 %v88, %v113
    %115 = vdwg.mxu0
    %v116 = vmax.f32 %v108, 0.0
    %v117 = vmax.f32 %v111, 0.0
    %v118 = vmax.f32 %v114, 0.0
    %v119 = vld [vmem:[#allocation5] sm:$0xff]
    %v120 = vld [vmem:[#allocation5 + $0x8] sm:$0xff]
    %v121 = vld [vmem:[#allocation5 + $0x10] sm:$0xff]
    %v122 = vld [vmem:[#allocation5 + $0x18] sm:$0xff]
    %v123 = vld [vmem:[#allocation5 + $0x20] sm:$0xff]
    %v124 = vld [vmem:[#allocation5 + $0x28] sm:$0xff]
    %v125 = vld [vmem:[#allocation5 + $0x30] sm:$0xff]
    %v126 = vld [vmem:[#allocation5 + $0x38] sm:$0xff]
    %v127 = vld [vmem:[#allocation5 + $0x40] sm:$0xff]
    %v128 = vld [vmem:[#allocation5 + $0x48] sm:$0xff]
    %v129 = vld [vmem:[#allocation5 + $0x50] sm:$0xff]
    %v130 = vld [vmem:[#allocation5 + $0x58] sm:$0xff]
    %v131 = vld [vmem:[#allocation5 + $0x60] sm:$0xff]
    %v132 = vld [vmem:[#allocation5 + $0x68] sm:$0xff]
    %v133 = vld [vmem:[#allocation5 + $0x70] sm:$0xff]
    %v134 = vld [vmem:[#allocation5 + $0x78] sm:$0xff]
    %v135 = vld [vmem:[%s6] sm:$0x1]
    %v137 = vperm.slane %v135, 0
    %139 = vmatpush.msra.mxu0 %v134
    %140 = vmatpush.msra.mxu0 %v133
    %141 = vmatpush.msra.mxu0 %v132
    %142 = vmatpush.msra.mxu0 %v131
    %143 = vmatpush.msra.mxu0 %v130
    %144 = vmatpush.msra.mxu0 %v129
    %145 = vmatpush.msra.mxu0 %v128
    %146 = vmatpush.msra.mxu0 %v127
    %147 = vmatpush.msra.mxu0 %v126
    %148 = vmatpush.msra.mxu0 %v125
    %149 = vmatpush.msra.mxu0 %v124
    %150 = vmatpush.msra.mxu0 %v123
    %151 = vmatpush.msra.mxu0 %v122
    %152 = vmatpush.msra.mxu0 %v121
    %153 = vmatpush.msra.mxu0 %v120
    %154 = vmatpush.msra.mxu0 %v119
    %155 = vmatmul.f32.gmra.mxu0 %v116
    %v156 = vpop.f32.mrf.mxu0
    %v157 = vadd.f32 %v137, %v156
    %158 = vmatmul.f32.gmra.mxu0 %v117
    %v159 = vpop.f32.mrf.mxu0
    %v160 = vadd.f32 %v137, %v159
    %161 = vmatmul.f32.gmra.mxu0 %v118
    %v162 = vpop.f32.mrf.mxu0
    %v163 = vadd.f32 %v137, %v162
    %164 = vdwg.mxu0
    %165 = vst [vmem:[%s7] sm:$0xff] %v157
    %166 = vst [vmem:[%s8] sm:$0xff] %v160
    %167 = vst [vmem:[%s9] sm:$0xff] %v163
    // Predicated region
    $region38: #{triplet_net_forward.1} parent=1 // pred_check
      _
    $region39: #{triplet_net_forward.1} parent=1 // pred_check_branch
      %169 = sbr.rel (0) target = $region41
    $region40: #{triplet_net_forward.1} parent=1 // pred_region
      _
    $region41: #{triplet_net_forward.1} parent=1 // pred_fallthru
      _
    // Predicated region
    $region42: #{triplet_net_forward.1} parent=1 // pred_check
      _
    $region43: #{triplet_net_forward.1} parent=1 // pred_check_branch
      %171 = sbr.rel (0) target = $region45
    $region44: #{triplet_net_forward.1} parent=1 // pred_region
      _
    $region45: #{triplet_net_forward.1} parent=1 // pred_fallthru
      _
    // Predicated region
    $region46: #{triplet_net_forward.1} parent=1 // pred_check
      _
    $region47: #{triplet_net_forward.1} parent=1 // pred_check_branch
      %173 = sbr.rel (0) target = $region49
    $region48: #{triplet_net_forward.1} parent=1 // pred_region
      _
    $region49: #{triplet_net_forward.1} parent=1 // pred_fallthru
      _
    // Predicated region
    $region50: #{triplet_net_forward.1} parent=1 // pred_check
      _
    $region51: #{triplet_net_forward.1} parent=1 // pred_check_branch
      %175 = sbr.rel (0) target = $region53
    $region52: #{triplet_net_forward.1} parent=1 // pred_region
      _
    $region53: #{triplet_net_forward.1} parent=1 // pred_fallthru
      _
    // Predicated region
    $region54: #{triplet_net_forward.1} parent=1 // pred_check
      _
    $region55: #{triplet_net_forward.1} parent=1 // pred_check_branch
      %177 = sbr.rel (0) target = $region57
    $region56: #{triplet_net_forward.1} parent=1 // pred_region
      _
    $region57: #{triplet_net_forward.1} parent=1 // pred_fallthru
      _
    // Predicated region
    $region58: #{triplet_net_forward.1} parent=1 // pred_check
      _
    $region59: #{triplet_net_forward.1} parent=1 // pred_check_branch
      %179 = sbr.rel (0) target = $region61
    $region60: #{triplet_net_forward.1} parent=1 // pred_region
      _
    $region61: #{triplet_net_forward.1} parent=1 // pred_fallthru
      _
    %180 = vsyncpa [#allocation4], 1
    %181 = vsyncpa [#allocation6], 1

</llo_original>
